<compile_context>
chip_gen: v6e
topology: v6e:2x2x1
jax: 0.10.0
libtpu: 0.0.40
codegen_flags: <defaults>
</compile_context>

<pallas_src>
from functools import partial
from math import gcd

import jax
import jax.numpy as jnp
from jax import lax
from jax.experimental import pallas as pl
from jax.experimental.pallas import tpu as pltpu

_LANE = 128
_CHUNK_LANES = 512              # in-kernel sub-chunk target (bounds live vregs << 64)
_BLOCK_BYTES = 2 * 1024 * 1024  # per-grid-step input DMA target (amortises ~0.35 us/step)


def _lcm(a: int, b: int) -> int:
    return a // gcd(a, b) * b


def _fake_seq2reward_kernel(x_ref, out_ref, *, seq_len, num_action, chunk, n_chunks):
    """x_ref:  (seq_len, TB) block of the lane-flat (seq_len, batch*num_action) input.
    out_ref: (1, TB) float32.  Lane j holds the reward of batch j // num_action on the
    lanes where j % num_action == num_action - 1 (all other lanes are don't-care)."""
    S, A = seq_len, num_action

    # Positional weights 10**(S-1-t), one value per sublane (timestep); built once per
    # grid step from a sublane iota + short select chain, reused by every chunk.
    t_idx = lax.broadcasted_iota(jnp.int32, (S, chunk), 0)
    w = jnp.full((S, chunk), 10 ** (S - 1), dtype=jnp.int32)
    for t in range(1, S):
        w = jnp.where(t_idx == t, jnp.int32(10 ** (S - 1 - t)), w)

    def process(start):
        x = x_ref[:, pl.ds(start, chunk)]                      # (S, chunk), native dtype
        # Group-of-A argmax: shift candidate a onto each group's last lane (static
        # lane shift), then per-lane compare/select over the full (S, chunk) tile.
        # Strict '>' keeps first-occurrence ties (torch.argmax behaviour).
        # NOTE: NaN candidates are never selected (unless at index 0), unlike argmax.
        best_val = jnp.roll(x, A - 1, axis=1) if A > 1 else x  # candidate a = 0
        best_idx = jnp.zeros((S, chunk), jnp.int32)
        for a in range(1, A):
            k = A - 1 - a
            v = jnp.roll(x, k, axis=1) if k else x             # candidate a
            gt = v > best_val
            best_idx = jnp.where(gt, jnp.int32(a), best_idx)
            best_val = jnp.where(gt, v, best_val)
        # Decimal positional encoding; int32 is exact for seq_len <= 9.
        acc = jnp.sum(best_idx * w, axis=0, keepdims=True)     # (1, chunk) int32
        out_ref[:, pl.ds(start, chunk)] = acc.astype(out_ref.dtype)

    if n_chunks == 1:
        process(0)
    else:
        # Walk the fat block in ~512-lane chunks to bound vreg live ranges; the
        # tiny per-chunk VPU/XLU work stays hidden under the block DMA.
        def body(ci, carry):
            process(pl.multiple_of(ci * chunk, _LANE))
            return carry

        lax.fori_loop(0, n_chunks, body, 0)


@jax.jit
def fake_seq2reward_forward(action: jax.Array) -> jax.Array:
    """action: (seq_len, batch, num_action) -> acc_reward: (batch, 1) float32.

    The `state` / `valid_reward_len` inputs of the original module are unused
    (as in the reference), so they are omitted here.
    """
    S, B, A = action.shape
    if S > 9:
        raise ValueError("int32 positional encoding is exact only for seq_len <= 9")
    if A > 10:
        raise ValueError("decimal-digit encoding matches the reference only for num_action <= 10")
    W = B * A

    # Zero-copy layout: collapsing the contiguous (batch, action) minor dims is free.
    x = action.reshape(S, W)

    # Lane granularity: multiple of lcm(A, 128) so no action-group straddles a
    # chunk/block boundary and every chunk start stays 128-lane aligned.
    granule = _lcm(A, _LANE)
    chunk = granule * max(1, -(-_CHUNK_LANES // granule))      # ~512-1280 lanes

    if W <= chunk:
        # Single block whose dims equal the full array dims (no divisibility constraints).
        chunk = tb = W
        n_chunks = num_tiles = 1
    else:
        per_chunk_bytes = action.dtype.itemsize * S * chunk
        n_chunks = max(1, min(_BLOCK_BYTES // per_chunk_bytes, W // chunk))
        tb = n_chunks * chunk
        num_tiles = -(-W // tb)   # ceil; last block may be partial (garbage lanes discarded)

    out = pl.pallas_call(
        partial(_fake_seq2reward_kernel, seq_len=S, num_action=A,
                chunk=chunk, n_chunks=n_chunks),
        out_shape=jax.ShapeDtypeStruct((1, W), jnp.float32),
        grid=(num_tiles,),
        in_specs=[pl.BlockSpec((S, tb), lambda i: (0, i))],
        out_specs=pl.BlockSpec((1, tb), lambda i: (0, i)),
        compiler_params=pltpu.CompilerParams(
            # TODO(synk): on v7x, mark this axis pltpu.CORE_PARALLEL (or use
            # pl.core_map over a 2-core mesh) to split batch tiles across both
            # TensorCores; "parallel" is effectively a no-op on 1-TC v5e/v6e.
            dimension_semantics=("parallel",),
            # 2*(S*tb*4) + 2*(tb*4) stays ~5-6 MiB << 32 MiB on v5e/v6e/v7x.
            vmem_limit_bytes=32 * 1024 * 1024,
        ),
    )(x)

    # Each batch element's reward sits on its group's last action lane (a == A-1);
    # this gather touches only B*A values -- negligible vs the single input pass.
    return out.reshape(B, A)[:, A - 1:]


def _reference(action: jax.Array) -> jax.Array:
    # Pure-JAX reference mirroring the PyTorch semantics.
    S, B, A = action.shape
    idx = jnp.argmax(action, axis=2).astype(jnp.float32)            # (S, B)
    powers = 10.0 ** jnp.arange(S - 1, -1, -1, dtype=jnp.float32)    # (S,)
    return jnp.sum(idx * powers[:, None], axis=0)[:, None]           # (B, 1)


if __name__ == "__main__":
    key = jax.random.PRNGKey(0)
    k1, k2 = jax.random.split(key)

    # 1) canonical tiny shape from the module docstring: seq_len=3, batch=2, num_action=2
    a1 = jax.random.uniform(k1, (3, 2, 2), dtype=jnp.float32)
    o1 = jax.block_until_ready(fake_seq2reward_forward(a1))
    r1 = _reference(a1)
    assert o1.shape == (2, 1), o1.shape
    assert jnp.allclose(o1, r1), (o1, r1)

    # 2) larger batch: multi-tile grid, partial last block, in-kernel chunk loop
    a2 = jax.random.uniform(k2, (4, 700, 3), dtype=jnp.float32)
    o2 = jax.block_until_ready(fake_seq2reward_forward(a2))
    r2 = _reference(a2)
    assert o2.shape == (700, 1), o2.shape
    assert jnp.allclose(o2, r2), (o2, r2)

    print("KERNEL_OK")
</pallas_src>

<mosaic_0001>
module attributes {stable_mosaic.version = 11 : i64} {
  func.func @_fake_seq2reward_kernel(%arg0: i32, %arg1: memref<3x4xf32, #tpu.memory_space<vmem>>, %arg2: memref<1x4xf32, #tpu.memory_space<vmem>>) attributes {dimension_semantics = [#tpu.dimension_semantics<parallel>], iteration_bounds = array<i64: 1>, scalar_prefetch = 0 : i64, scratch_operands = 0 : i64, tpu.core_type = #tpu.core_type<tc>, window_params = [{transform_indices = @transform_0, window_bounds = array<i64: 3, 4>}, {transform_indices = @transform_1, window_bounds = array<i64: 1, 4>}]} {
    %0 = tpu.iota {dimensions = array<i32: 0>} : vector<3x4xi32>
    %c100_i32 = arith.constant 100 : i32
    %1 = vector.broadcast %c100_i32 : i32 to vector<3x4xi32>
    %c1_i32 = arith.constant 1 : i32
    %2 = vector.broadcast %c1_i32 : i32 to vector<3x4xi32>
    %3 = arith.cmpi eq, %0, %2 : vector<3x4xi32>
    %c10_i32 = arith.constant 10 : i32
    %4 = vector.broadcast %c10_i32 : i32 to vector<3x4xi32>
    %5 = arith.select %3, %4, %1 : vector<3x4xi1>, vector<3x4xi32>
    %c2_i32 = arith.constant 2 : i32
    %6 = vector.broadcast %c2_i32 : i32 to vector<3x4xi32>
    %7 = arith.cmpi eq, %0, %6 : vector<3x4xi32>
    %c1_i32_0 = arith.constant 1 : i32
    %8 = vector.broadcast %c1_i32_0 : i32 to vector<3x4xi32>
    %9 = arith.select %7, %8, %5 : vector<3x4xi1>, vector<3x4xi32>
    %c0 = arith.constant 0 : index
    %c0_1 = arith.constant 0 : index
    %10 = vector.load %arg1[%c0, %c0_1] : memref<3x4xf32, #tpu.memory_space<vmem>>, vector<3x4xf32>
    %11 = vector.extract_strided_slice %10 {offsets = [0, 3], sizes = [3, 1], strides = [1, 1]} : vector<3x4xf32> to vector<3x1xf32>
    %12 = vector.extract_strided_slice %10 {offsets = [0, 0], sizes = [3, 3], strides = [1, 1]} : vector<3x4xf32> to vector<3x3xf32>
    %13 = tpu.concatenate %11, %12 in 1 : vector<3x1xf32>, vector<3x3xf32> -> vector<3x4xf32>
    %c0_i32 = arith.constant 0 : i32
    %14 = vector.broadcast %c0_i32 : i32 to vector<3x4xi32>
    %15 = arith.cmpf ogt, %10, %13 : vector<3x4xf32>
    %c1_i32_2 = arith.constant 1 : i32
    %16 = vector.broadcast %c1_i32_2 : i32 to vector<3x4xi32>
    %17 = arith.select %15, %16, %14 : vector<3x4xi1>, vector<3x4xi32>
    %18 = arith.muli %17, %9 : vector<3x4xi32>
    %cst = arith.constant dense<0> : vector<4xi32>
    %19 = vector.multi_reduction <add>, %18, %cst [0] : vector<3x4xi32> to vector<4xi32>
    %20 = vector.shape_cast %19 : vector<4xi32> to vector<1x4xi32>
    %21 = arith.sitofp %20 : vector<1x4xi32> to vector<1x4xf32>
    %c0_3 = arith.constant 0 : index
    %c0_4 = arith.constant 0 : index
    %22 = vector.load %arg2[%c0_3, %c0_4] : memref<1x4xf32, #tpu.memory_space<vmem>>, vector<1x4xf32>
    tpu.vector_store %arg2[%c0_3, %c0_4], %21 {strides = array<i32>} : memref<1x4xf32, #tpu.memory_space<vmem>>, vector<1x4xf32>,
    return
  }
  func.func @transform_0(%arg0: i32) -> (i32, i32) {
    %c0_i32 = arith.constant 0 : i32
    %c0_i32_0 = arith.constant 0 : i32
    return %c0_i32, %arg0 : i32, i32
  }
  func.func @transform_1(%arg0: i32) -> (i32, i32) {
    %c0_i32 = arith.constant 0 : i32
    %c0_i32_0 = arith.constant 0 : i32
    return %c0_i32, %arg0 : i32, i32
  }
}

</mosaic_0001>

<llo_original>
// kernel: fake_seq2reward_forward.1
$region0: #{fake_seq2reward_forward.1}
  #allocation0 [shape = 'u32[]', space=smem, size = 0x4, offset = 0x4, fixed_abs, tag = 'smem constant byte address 0x4 - core index']
  #allocation1 [shape = 'u32[144,128]{1,0:T(1,128)}', space=vmem, size = 0x12000, scoped, tag = 'internal scratch']
  %s0 = inlined_call_operand.vmem [shape: f32[3,4], index: 0, kind: input, shape index: {}]
  %s1 = inlined_call_operand.vmem [shape: f32[1,4], index: 1, kind: output, shape index: {}]
  %s2 = sld [smem:[#allocation0]]
  $region14: #{fake_seq2reward_forward.1} parent=0
    _
  %s4 = ssub.s32 1, %s2
  %s5 = scalar_select 0, %s4, %s2
  // Predicated region
  $region2: #{fake_seq2reward_forward.1} parent=0 // pred_check
    _
  $region3: #{fake_seq2reward_forward.1} parent=0 // pred_check_branch
    %7 = sbr.rel (0) target = $region5
  $region4: #{fake_seq2reward_forward.1} parent=0 // pred_region
    _
  $region5: #{fake_seq2reward_forward.1} parent=0 // pred_fallthru
    _
  %v8 = vlaneseq
  %v9 = vshrl.u32 %v8, 7
  %vm10 = vcmp.eq.s32.totalorder %v9, 1
  %v11 = vsel %vm10, 10, 100
  %vm12 = vcmp.eq.s32.totalorder %v9, 2
  %v13 = vsel %vm12, 1, %v11
  %v14 = vld [vmem:[%s0] sm:$0x7]
  %16 = vrot.lane.b32.xlu0 %v14, 125
  %v17 = vpop.permute.xlu0 %16
  %19 = vrot.lane.b32.xlu0 %v14, 1
  %v20 = vpop.permute.xlu0 %19
  %vm22 = vcmask 7168
  %v23 = vsel %vm22, %v17, %v20
  %vm24 = vcmp.gt.f32.partialorder %v14, %v23
  %v25 = vsel %vm24, 1, 0
  %v26 = vmul.u32 %v25, %v13
  %vm27 = vcmask 26624
  %v28 = vsel %vm27, %v26, 0
  %v29 = vrot.slane %v28, 4
  %v30 = vadd.s32 %v28, %v29
  %v31 = vrot.slane %v30, 2
  %v32 = vadd.s32 %v30, %v31
  %v33 = vrot.slane %v32, 1
  %v34 = vadd.s32 %v32, %v33
  %v35 = vcvt.s32.f32 %v34
  %vm36 = vcmask 24576
  %37 = vst.msk [vmem:[%s1] sm:$0x1] %vm36, %v35
  // Predicated region
  $region6: #{fake_seq2reward_forward.1} parent=0 // pred_check
    _
  $region7: #{fake_seq2reward_forward.1} parent=0 // pred_check_branch
    %39 = sbr.rel (0) target = $region9
  $region8: #{fake_seq2reward_forward.1} parent=0 // pred_region
    _
  $region9: #{fake_seq2reward_forward.1} parent=0 // pred_fallthru
    _
  // Predicated region
  $region10: #{fake_seq2reward_forward.1} parent=0 // pred_check
    _
  $region11: #{fake_seq2reward_forward.1} parent=0 // pred_check_branch
    %41 = sbr.rel (0) target = $region13
  $region12: #{fake_seq2reward_forward.1} parent=0 // pred_region
    _
  $region13: #{fake_seq2reward_forward.1} parent=0 // pred_fallthru
    _

</llo_original>
